<compile_context>
chip_gen: v7x
topology: tpu7x:2x2x1
jax: 0.10.0
libtpu: 0.0.40
codegen_flags: <defaults>
</compile_context>

<pallas_src>
import jax
import jax.numpy as jnp
from jax.experimental import pallas as pl
from jax.experimental.pallas import tpu as pltpu


def _pos_enc_kernel(pos_ref, x_ref, o_ref):
    # pos_ref: (ts, 1) f32 global positions for this seq tile
    # x_ref/o_ref: (tb, ts, D) tile of the activations
    _, _, D = x_ref.shape  # D == global model dim (D axis is never tiled)

    pos = pos_ref[...]                                    # (ts, 1)
    j = jax.lax.broadcasted_iota(jnp.int32, (1, D), 1)    # column index
    odd = j & 1                                           # parity via bit op (no mod)
    two_i = (j - odd).astype(jnp.float32)                 # 2*(j//2) without div
    inv_freq = jnp.exp(
        two_i * (-jnp.log(jnp.float32(10000.0)) / jnp.float32(D))
    )                                                     # (1, D): D exps, not ts*D
    phase = odd.astype(jnp.float32) * jnp.float32(jnp.pi / 2.0)
    # sin(a + pi/2) == cos(a): single transcendental instead of sin AND cos
    pe = jnp.sin(pos * inv_freq + phase)                  # (ts, D), f32

    # (tb, ts, D) + (1, ts, D) broadcast on the VPU; pure elementwise add.
    o_ref[...] = x_ref[...] + pe[None, :, :].astype(o_ref.dtype)


def _pick_tiles(B, S, D, itemsize, tile_budget_bytes=4 * 1024 * 1024):
    """Pick (batch_tile, seq_tile) so one (tb, ts, D) tile fits the budget.

    ~4 resident tiles (double-buffered in + out) stay well under the 32 MiB
    scoped-VMEM default; seq tile is a multiple of 8 sublanes or the full S.
    """
    row_bytes = max(1, D * itemsize)
    tb = B
    if tb * 8 * row_bytes > tile_budget_bytes:
        tb = max(1, tile_budget_bytes // (8 * row_bytes))
    tb = min(tb, B)
    rows = tile_budget_bytes // max(1, tb * row_bytes)
    ts = S if rows >= S else max(8, (rows // 8) * 8)
    return tb, ts


def positional_encoding(x, *, seq_tile=None, batch_tile=None, donate_input=False):
    """x: (B, S, D) float array. Returns x + pe[:, :S] (PyTorch-equivalent)."""
    B, S, D = x.shape
    tb, ts = _pick_tiles(B, S, D, x.dtype.itemsize)
    if seq_tile is not None:
        ts = seq_tile
    if batch_tile is not None:
        tb = batch_tile
    num_b = pl.cdiv(B, tb)
    num_s = pl.cdiv(S, ts)

    # Tiny (S, 1) f32 position column; the kernel reads the (ts, 1) slice for
    # its seq tile, so no pl.program_id is ever needed inside the kernel.
    positions = jnp.arange(S, dtype=jnp.float32).reshape(S, 1)

    extra = {}
    if donate_input:
        extra["input_output_aliases"] = {1: 0}  # x is input index 1

    return pl.pallas_call(
        _pos_enc_kernel,
        out_shape=jax.ShapeDtypeStruct((B, S, D), x.dtype),
        grid=(num_b, num_s),
        in_specs=[
            pl.BlockSpec((ts, 1), lambda b, s: (s, 0)),          # positions
            pl.BlockSpec((tb, ts, D), lambda b, s: (b, s, 0)),   # x
        ],
        out_specs=pl.BlockSpec((tb, ts, D), lambda b, s: (b, s, 0)),
        compiler_params=pltpu.CompilerParams(
            dimension_semantics=("parallel", "parallel"),
        ),
        **extra,
    )(positions, x)


def _reference(x):
    B, S, D = x.shape
    pos = jnp.arange(S, dtype=jnp.float32)[:, None]
    div_term = jnp.exp(
        jnp.arange(0, D, 2, dtype=jnp.float32) * (-jnp.log(10000.0) / D)
    )
    pe = jnp.zeros((S, D), jnp.float32)
    pe = pe.at[:, 0::2].set(jnp.sin(pos * div_term))
    pe = pe.at[:, 1::2].set(jnp.cos(pos * div_term))
    return x + pe[None, :, :].astype(x.dtype)


if __name__ == "__main__":
    key = jax.random.PRNGKey(0)

    # Small shape consistent with the module: batch=2, seq=8, model_dim=32.
    B, S, D = 2, 8, 32
    x = jax.random.normal(key, (B, S, D), dtype=jnp.float32)
    out = jax.block_until_ready(positional_encoding(x))
    assert out.shape == (B, S, D)
    assert jnp.allclose(out, _reference(x), atol=1e-5, rtol=1e-5)

    # Second (still small) case exercising the multi-tile seq path.
    x2 = jax.random.normal(jax.random.PRNGKey(0), (2, 64, 128), dtype=jnp.float32)
    out2 = jax.block_until_ready(positional_encoding(x2, seq_tile=16))
    assert jnp.allclose(out2, _reference(x2), atol=1e-5, rtol=1e-5)

    print("KERNEL_OK")
</pallas_src>

<mosaic_0001>
module attributes {stable_mosaic.version = 11 : i64} {
  func.func @_pos_enc_kernel(%arg0: i32, %arg1: i32, %arg2: memref<8x1xf32, #tpu.memory_space<vmem>>, %arg3: memref<2x8x32xf32, #tpu.memory_space<vmem>>, %arg4: memref<2x8x32xf32, #tpu.memory_space<vmem>>) attributes {dimension_semantics = [#tpu.dimension_semantics<parallel>, #tpu.dimension_semantics<parallel>], iteration_bounds = array<i64: 1, 1>, scalar_prefetch = 0 : i64, scratch_operands = 0 : i64, tpu.core_type = #tpu.core_type<tc>, window_params = [{transform_indices = @transform_0, window_bounds = array<i64: 8, 1>}, {transform_indices = @transform_1, window_bounds = array<i64: 2, 8, 32>}, {transform_indices = @transform_2, window_bounds = array<i64: 2, 8, 32>}]} {
    %c0 = arith.constant 0 : index
    %c0_0 = arith.constant 0 : index
    %0 = vector.load %arg2[%c0, %c0_0] : memref<8x1xf32, #tpu.memory_space<vmem>>, vector<8x1xf32>
    %1 = tpu.iota {dimensions = array<i32: 1>} : vector<1x32xi32>
    %c1_i32 = arith.constant 1 : i32
    %2 = vector.broadcast %c1_i32 : i32 to vector<1x32xi32>
    %3 = arith.andi %1, %2 : vector<1x32xi32>
    %4 = arith.subi %1, %3 : vector<1x32xi32>
    %5 = arith.sitofp %4 : vector<1x32xi32> to vector<1x32xf32>
    %cst = arith.constant 1.000000e+04 : f32
    %6 = math.log %cst : f32
    %cst_1 = arith.constant 0.000000e+00 : f32
    %7 = arith.subf %cst_1, %6 : f32
    %cst_2 = arith.constant 3.200000e+01 : f32
    %8 = arith.divf %7, %cst_2 : f32
    %9 = vector.broadcast %8 : f32 to vector<1x32xf32>
    %10 = arith.mulf %5, %9 : vector<1x32xf32>
    %11 = math.exp %10 : vector<1x32xf32>
    %12 = arith.sitofp %3 : vector<1x32xi32> to vector<1x32xf32>
    %cst_3 = arith.constant 1.57079637 : f32
    %13 = vector.broadcast %cst_3 : f32 to vector<1x32xf32>
    %14 = arith.mulf %12, %13 : vector<1x32xf32>
    %15 = vector.broadcast %0 : vector<8x1xf32> to vector<8x32xf32>
    %16 = vector.broadcast %11 : vector<1x32xf32> to vector<8x32xf32>
    %17 = arith.mulf %15, %16 : vector<8x32xf32>
    %18 = vector.broadcast %14 : vector<1x32xf32> to vector<8x32xf32>
    %19 = arith.addf %17, %18 : vector<8x32xf32>
    %20 = math.sin %19 : vector<8x32xf32>
    %c0_4 = arith.constant 0 : index
    %c0_5 = arith.constant 0 : index
    %c0_6 = arith.constant 0 : index
    %21 = vector.load %arg3[%c0_4, %c0_5, %c0_6] : memref<2x8x32xf32, #tpu.memory_space<vmem>>, vector<2x8x32xf32>
    %22 = vector.shape_cast %20 : vector<8x32xf32> to vector<1x8x32xf32>
    %23 = vector.broadcast %22 : vector<1x8x32xf32> to vector<2x8x32xf32>
    %24 = arith.addf %21, %23 : vector<2x8x32xf32>
    %c0_7 = arith.constant 0 : index
    %c0_8 = arith.constant 0 : index
    %c0_9 = arith.constant 0 : index
    %25 = vector.load %arg4[%c0_7, %c0_8, %c0_9] : memref<2x8x32xf32, #tpu.memory_space<vmem>>, vector<2x8x32xf32>
    tpu.vector_store %arg4[%c0_7, %c0_8, %c0_9], %24 {strides = array<i32>} : memref<2x8x32xf32, #tpu.memory_space<vmem>>, vector<2x8x32xf32>,
    return
  }
  func.func @transform_0(%arg0: i32, %arg1: i32) -> (i32, i32) {
    %c0_i32 = arith.constant 0 : i32
    %c0_i32_0 = arith.constant 0 : i32
    return %arg1, %c0_i32 : i32, i32
  }
  func.func @transform_1(%arg0: i32, %arg1: i32) -> (i32, i32, i32) {
    %c0_i32 = arith.constant 0 : i32
    %c0_i32_0 = arith.constant 0 : i32
    return %arg0, %arg1, %c0_i32 : i32, i32, i32
  }
  func.func @transform_2(%arg0: i32, %arg1: i32) -> (i32, i32, i32) {
    %c0_i32 = arith.constant 0 : i32
    %c0_i32_0 = arith.constant 0 : i32
    return %arg0, %arg1, %c0_i32 : i32, i32, i32
  }
}

</mosaic_0001>

<llo_original>
// kernel: tpu_custom_call.1
$region0: #{tpu_custom_call.1}
  #allocation0 [shape = 'u32[]', space=smem, size = 0x4, offset = 0x4, fixed_abs, tag = 'smem constant byte address 0x4 - core index']
  #allocation1 [shape = 'u32[144,128]{1,0:T(1,128)}', space=vmem, size = 0x12000, scoped, tag = 'internal scratch']
  %s0 = inlined_call_operand.vmem [shape: f32[8,1], index: 0, kind: input, shape index: {}]
  %s1 = inlined_call_operand.hbm [shape: f32[2,8,32], index: 1, kind: input, shape index: {}]
  %s2 = inlined_call_operand.hbm [shape: f32[2,8,32], index: 2, kind: output, shape index: {}]
  %s3 = sld [smem:[#allocation0]]
  $region22: #{tpu_custom_call.1} parent=0
    _
  %s5 = ssub.s32 1, %s3
  %s6 = scalar_select 0, %s5, %s3
  $region1: #{tpu_custom_call.1} parent=0
    #allocation2 [shape = 'u8[8192]{0}', space=vmem, size = 0x2000, scoped, tag = 'input window, operand 1, single buffered']
    #allocation3 [shape = 's32[1]{0}', space=sflag, size = 0x4, scoped, tag = 'scoped memory for tpu_custom_call.1']
    #allocation4 [shape = 's32[1]{0}', space=sflag, size = 0x4, scoped, tag = 'scoped memory for tpu_custom_call.1']
    #allocation5 [shape = 'u8[8192]{0}', space=vmem, size = 0x2000, scoped, tag = 'output window, operand 0, single buffered']
    %7 = vsyncpa [#allocation3], 0
    %8 = vsyncpa [#allocation4], 0
    // Predicated region
    $region2: #{tpu_custom_call.1} parent=1 // pred_check
      _
    $region3: #{tpu_custom_call.1} parent=1 // pred_check_branch
      %10 = sbr.rel (0) target = $region5
    $region4: #{tpu_custom_call.1} parent=1 // pred_region
      _
    $region5: #{tpu_custom_call.1} parent=1 // pred_fallthru
      _
    // Predicated region
    $region6: #{tpu_custom_call.1} parent=1 // pred_check
      _
    $region7: #{tpu_custom_call.1} parent=1 // pred_check_branch
      %12 = sbr.rel (0) target = $region9
    $region8: #{tpu_custom_call.1} parent=1 // pred_region
      %s14 = ssub.s32 256, 256
      %15 = vsyncadd [#allocation3], %s14
      %s16 = sshll.u32 [#allocation2], 4
      %s17 = int_to_ptr.vmem [resolvable:$true] %s16
      %22 = dma.hbm_to_vmem [thread:$0]  %s1, 256, %s17, [#allocation3], 128, 128, 8
    $region9: #{tpu_custom_call.1} parent=1 // pred_fallthru
      _
    // Predicated region
    $region10: #{tpu_custom_call.1} parent=1 // pred_check
      _
    $region11: #{tpu_custom_call.1} parent=1 // pred_check_branch
      %24 = sbr.rel (0) target = $region13
    $region12: #{tpu_custom_call.1} parent=1 // pred_region
      %25 = dma.done [#allocation3], 256
    $region13: #{tpu_custom_call.1} parent=1 // pred_fallthru
      _
    %v26 = vld [vmem:[%s0] sm:$0xff]
    %v27 = vlaneseq
    %v28 = vand.u32 %v27, 127
    %v29 = vand.u32 %v28, 1
    %v30 = vsub.s32 %v28, %v29
    %v31 = vcvt.s32.f32 %v30
    %v32 = vmul.f32 %v31, -0.28782314
    %v33 = vmul.f32 %v32, 1.442695
    %v34 = vpow.pop %v33
    %v35 = vcvt.s32.f32 %v29
    %v36 = vmul.f32 %v35, 1.5707964
    %38 = vset.pattern.permute.xlu0 0
    %39 = vperm.xlu0 %38, %v26
    %v40 = vpop.permute.xlu0 %39
    %v42 = vmul.f32 %v40, %v34
    %v43 = vadd.f32 %v42, %v36
    %v44 = vand.u32 2147483647, %v43
    %vm45 = vcmp.le.f32.partialorder %v44, 0.7853982
    %vm46 = vcmp.lt.s32.totalorder %v43, 0
    %v47 = vand.u32 %v43, 2139095040
    %v48 = vshrl.u32 %v47, 23
    %v49 = vsub.s32 %v48, 127
    %v50 = vand.u32 2147483647, %v43
    %v51 = vand.u32 %v50, 8388607
    %v52 = vor.u32 %v51, 8388608
    %v53 = vsub.s32 0, %v52
    %v54 = vadd.s32 %v49, 1
    %vm55 = vcmp.gt.s32.totalorder %v54, 0
    %v56 = vsel %vm55, %v54, 0
    %v57 = vshrl.u32 %v56, 5
    %v58 = vand.u32 %v56, 31
    %v59 = vsub.s32 32, %v58
    %v60 = vshrl.u32 683565275, %v59
    %v61 = vshll.u32 683565275, %v58
    %v62 = vshrl.u32 2475754826, %v59
    %v63 = vor.u32 %v61, %v62
    %v64 = vshll.u32 2475754826, %v58
    %v65 = vshrl.u32 2131351028, %v59
    %v66 = vor.u32 %v64, %v65
    %v67 = vshll.u32 2131351028, %v58
    %v68 = vshrl.u32 2102212464, %v59
    %v69 = vor.u32 %v67, %v68
    %v70 = vshll.u32 2102212464, %v58
    %v71 = vshrl.u32 920167782, %v59
    %v72 = vor.u32 %v70, %v71
    %v73 = vshll.u32 920167782, %v58
    %v74 = vshrl.u32 1326507024, %v59
    %v75 = vor.u32 %v73, %v74
    %vm76 = vcmp.lt.s32.totalorder %v57, 1
    %vm77 = vcmp.lt.s32.totalorder %v57, 2
    %vm78 = vcmp.lt.s32.totalorder %v57, 3
    %vm79 = vcmp.lt.s32.totalorder %v57, 4
    %v80 = vsel %vm76, %v60, %v63
    %v81 = vsel %vm79, %v69, 2102212464
    %v82 = vsel %vm78, %v66, %v81
    %v83 = vsel %vm77, %v80, %v82
    %v84 = vsel %vm76, %v63, %v66
    %v85 = vsel %vm79, %v72, 920167782
    %v86 = vsel %vm78, %v69, %v85
    %v87 = vsel %vm77, %v84, %v86
    %v88 = vsel %vm76, %v66, %v69
    %v89 = vsel %vm79, %v75, 1326507024
    %v90 = vsel %vm78, %v72, %v89
    %v91 = vsel %vm77, %v88, %v90
    %v92 = vshll.u32 %v52, 8
    %v93 = vmul.u32.u64.compose %v92, %v91
    %v94 = vextract.low.u32 %v93
    %v95 = vextract.high.u32 %v93
    %v96 = vmul.u32.u64.compose %v92, %v87
    %v97 = vextract.low.u32 %v96
    %v98 = vextract.high.u32 %v96
    %v99 = vmul.u32 %v92, %v83
    %v100 = vadd.s32 %v95, %v97
    %vm101 = vc.u32 %v95, %v97
    %v102 = vadd.s32 %v98, 1
    %v103 = vsel %vm101, %v102, %v98
    %v104 = vadd.s32 %v99, %v103
    %v105 = vadd.s32 %v104, 536870912
    %v106 = vshrl.u32 %v105, 30
    %v107 = vshll.u32 %v106, 30
    %v108 = vsub.s32 %v104, %v107
    %vm109 = vcmp.lt.s32.totalorder %v108, 0
    %v110 = vsub.s32 0, %v108
    %v111 = vsel %vm109, %v110, %v108
    %v112 = vclz %v111
    %v113 = vsub.s32 %v112, 2
    %vm114 = vcmp.gt.s32.totalorder 0, %v113
    %v115 = vsel %vm114, 0, %v113
    %v116 = vsub.s32 32, %v115
    %v117 = vshll.u32 %v108, %v115
    %v118 = vshrl.u32 %v100, %v116
    %v119 = vor.u32 %v117, %v118
    %v120 = vsub.s32 4294967266, %v115
    %v121 = vadd.s32 %v120, 127
    %v122 = vshll.u32 %v121, 23
    %v123 = vor.u32 4788187, %v122
    %v124 = vand.u32 2147483647, %v123
    %v126 = vcvt.s32.f32 %v119
    %v127 = vmul.f32 %v126, %v124
    %v128 = vxor.u32 %v127, 2147483648
    %v129 = vsel %vm46, %v128, %v127
    %v130 = vsub.s32 4, %v106
    %v131 = vsel %vm46, %v130, %v106
    %v132 = vsel %vm45, %v43, %v129
    %v133 = vsel %vm45, 0, %v131
    %v134 = vcosq.f32.pop %v132
    %v135 = vsinq.f32.pop %v132
    %vm136 = vweird.f32 %v43
    %v137 = vadd.s32 %v133, 3
    %v138 = vand.u32 %v137, 3
    %vm139 = vcmp.lt.s32.totalorder %v138, 2
    %vm140 = vcmp.eq.s32.totalorder %v138, 0
    %v141 = vxor.u32 %v135, 2147483648
    %v142 = vsel %vm140, %v134, %v141
    %vm143 = vcmp.eq.s32.totalorder %v138, 2
    %v144 = vxor.u32 %v134, 2147483648
    %v145 = vsel %vm143, %v144, %v135
    %v146 = vsel %vm139, %v142, %v145
    %v147 = vsel %vm136, nan, %v146
    %v148 = vld [vmem:[#allocation2] sm:$0xff]
    %v149 = vld [vmem:[#allocation2 + $0x8] sm:$0xff]
    %v150 = vadd.f32 %v148, %v147
    %v151 = vadd.f32 %v149, %v147
    %vm152 = vcmask 261120
    %153 = vst.msk [vmem:[#allocation5] sm:$0xff] %vm152, %v150
    %154 = vst.msk [vmem:[#allocation5 + $0x8] sm:$0xff] %vm152, %v151
    // Predicated region
    $region14: #{tpu_custom_call.1} parent=1 // pred_check
      _
    $region15: #{tpu_custom_call.1} parent=1 // pred_check_branch
      %156 = sbr.rel (0) target = $region17
    $region16: #{tpu_custom_call.1} parent=1 // pred_region
      %s158 = ssub.s32 256, 256
      %159 = vsyncadd [#allocation4], %s158
      %s160 = sshll.u32 [#allocation5], 4
      %s161 = int_to_ptr.vmem [resolvable:$true] %s160
      %166 = dma.vmem_to_hbm [thread:$0]  %s161, 256, %s2, [#allocation4], 128, 128, 8
    $region17: #{tpu_custom_call.1} parent=1 // pred_fallthru
      _
    // Predicated region
    $region18: #{tpu_custom_call.1} parent=1 // pred_check
      _
    $region19: #{tpu_custom_call.1} parent=1 // pred_check_branch
      %168 = sbr.rel (0) target = $region21
    $region20: #{tpu_custom_call.1} parent=1 // pred_region
      %169 = dma.done [#allocation4], 256
    $region21: #{tpu_custom_call.1} parent=1 // pred_fallthru
      _
    %170 = vsyncpa [#allocation3], 1
    %171 = vsyncpa [#allocation4], 1

</llo_original>
